<compile_context>
chip_gen: v7x
topology: tpu7x:2x2x1
jax: 0.10.0
libtpu: 0.0.40
codegen_flags: <defaults>
</compile_context>

<pallas_src>
import functools

import jax
import jax.numpy as jnp
from jax.experimental import pallas as pl
from jax.experimental.pallas import tpu as pltpu


def _round_up(n, m):
    return ((n + m - 1) // m) * m


# -----------------------------------------------------------------------------
# Fused single-pass path: 1 HBM read + 1 HBM write of x.
# -----------------------------------------------------------------------------
def _fused_kernel(x_ref, w_ref, o_ref, *, inv_hw):
    # x_ref: (1, C, HW) slab of one batch.  w_ref: (C, C) Linear weight [out, in].
    C = x_ref.shape[1]

    # Per-channel spatial mean in f32, as a (C, 1) column (lane reduce, XLU).
    pooled_col = jnp.sum(x_ref[0].astype(jnp.float32), axis=-1,
                         keepdims=True) * jnp.float32(inv_hw)          # (C, 1)

    # Flip the tiny (C,1) column into a (1,C) row without MXU / relayout:
    # row[i] = sum_j pooled[j] * (j == i)   (VPU select + sublane reduce).
    rows = jax.lax.broadcasted_iota(jnp.int32, (C, C), 0)
    cols = jax.lax.broadcasted_iota(jnp.int32, (C, C), 1)
    pooled_row = jnp.sum(jnp.where(rows == cols, pooled_col, 0.0),
                         axis=0, keepdims=True)                        # (1, C)

    # gate[j] = sigmoid( sum_i w[j, i] * pooled[i] )  ==  sigmoid(pooled @ W.T)
    logits = jnp.sum(w_ref[...].astype(jnp.float32) * pooled_row,
                     axis=-1, keepdims=True)                           # (C, 1)
    gate = jax.nn.sigmoid(logits)                                      # EUP

    # Broadcast-multiply in the native dtype (no f32 round-trip on the slab);
    # re-index the ref so the slab is streamed from VMEM again (no huge live range).
    o_ref[0] = gate.astype(o_ref.dtype) * x_ref[0]


def _feature_enhancement_fused(x3, w, B, C, HW):
    kernel = functools.partial(_fused_kernel, inv_hw=1.0 / HW)
    return pl.pallas_call(
        kernel,
        out_shape=jax.ShapeDtypeStruct((B, C, HW), x3.dtype),
        grid_spec=pltpu.PrefetchScalarGridSpec(
            num_scalar_prefetch=0,
            grid=(B,),
            in_specs=[pl.BlockSpec((1, C, HW), lambda b: (b, 0, 0)),
                      pl.BlockSpec((C, C), lambda b: (0, 0))],   # weight stays resident
            out_specs=pl.BlockSpec((1, C, HW), lambda b: (b, 0, 0)),
        ),
        compiler_params=pltpu.CompilerParams(
            dimension_semantics=("parallel",),
            vmem_limit_bytes=48 * 1024 * 1024),
    )(x3, w)


# -----------------------------------------------------------------------------
# Fallback 2-pass path (large slabs): pad-free tiled reduce + tiled scale.
# -----------------------------------------------------------------------------
def _pool_sum_kernel(x_ref, s_ref, *, hw, tl):
    # x_ref: (TR, TL) tile of (B*C, H*W); s_ref: (TR, 1) f32 accumulator resident
    # across the HW-tile ("arbitrary") axis.
    j = pl.program_id(1)

    @pl.when(j == 0)
    def _():
        s_ref[...] = jnp.zeros_like(s_ref)

    x = x_ref[...].astype(jnp.float32)
    if hw % tl != 0:
        # Ragged edge HW tile: out-of-bounds lanes hold unspecified data -> mask.
        lane = j * tl + jax.lax.broadcasted_iota(jnp.int32, x.shape, 1)
        x = jnp.where(lane < hw, x, 0.0)
    s_ref[...] += jnp.sum(x, axis=-1, keepdims=True)


def _scale_kernel(g_ref, x_ref, o_ref):
    # g_ref: (TR, 1) gate; x_ref / o_ref: (TR, TL).  Multiply in the native dtype.
    o_ref[...] = g_ref[...].astype(o_ref.dtype) * x_ref[...]


def _feature_enhancement_two_pass(x2, w, B, C, HW, *, lane_tile=2048, row_tile=512):
    R = B * C

    # Lane tile: full HW when it fits (legal for any HW, no masking), else a
    # lane-dense 2048-wide tile (multiple of 128) with in-kernel edge masking.
    TL = HW if HW <= lane_tile else lane_tile
    # Row tile: full R (legal for any R); split into two 8-aligned row blocks
    # when possible so v7x's second TensorCore gets a parallel step.
    if R <= row_tile:
        TR = _round_up((R + 1) // 2, 8) if (R % 8 == 0 and R >= 16) else R
    else:
        TR = row_tile

    grid = (pl.cdiv(R, TR), pl.cdiv(HW, TL))
    vmem_limit = 48 * 1024 * 1024

    # ---- pass 1: per-(batch, channel) spatial sums ----
    sums = pl.pallas_call(
        functools.partial(_pool_sum_kernel, hw=HW, tl=TL),
        out_shape=jax.ShapeDtypeStruct((R, 1), jnp.float32),
        grid_spec=pltpu.PrefetchScalarGridSpec(
            num_scalar_prefetch=0,
            grid=grid,
            in_specs=[pl.BlockSpec((TR, TL), lambda i, j: (i, j))],
            out_specs=pl.BlockSpec((TR, 1), lambda i, j: (i, 0)),
        ),
        compiler_params=pltpu.CompilerParams(
            dimension_semantics=("parallel", "arbitrary"),
            vmem_limit_bytes=vmem_limit),
    )(x2)

    # ---- gate: tiny (B,C)@(C,C)^T matmul + sigmoid in XLA (negligible) ----
    pooled = (sums[:, 0] / jnp.float32(HW)).reshape(B, C)      # exact f32 mean
    gate = jax.nn.sigmoid(pooled @ w.astype(jnp.float32).T)    # PyTorch Linear, no bias
    gate = gate.reshape(R, 1)

    # ---- pass 2: tiled lane-dense broadcast-multiply (edge stores masked by Pallas) ----
    out = pl.pallas_call(
        _scale_kernel,
        out_shape=jax.ShapeDtypeStruct((R, HW), x2.dtype),
        grid_spec=pltpu.PrefetchScalarGridSpec(
            num_scalar_prefetch=0,
            grid=grid,
            in_specs=[pl.BlockSpec((TR, 1), lambda i, j: (i, 0)),
                      pl.BlockSpec((TR, TL), lambda i, j: (i, j))],
            out_specs=pl.BlockSpec((TR, TL), lambda i, j: (i, j)),
        ),
        compiler_params=pltpu.CompilerParams(
            dimension_semantics=("parallel", "parallel"),
            vmem_limit_bytes=vmem_limit),
    )(gate, x2)
    return out


# -----------------------------------------------------------------------------
# Public wrapper
# -----------------------------------------------------------------------------
def feature_enhancement(x, w, *, force_two_pass=False):
    """x: (B, C, H, W); w: (C, C) PyTorch Linear weight [out, in] -> (B, C, H, W)."""
    B, C, H, W = x.shape
    HW = H * W

    slab_bytes = C * HW * x.dtype.itemsize
    w_bytes = C * C * w.dtype.itemsize
    # Fused path needs ~2 input + 2 output slab buffers (+ weight) in VMEM;
    # the 40 MiB cutoff leaves headroom inside v7x's 64 MiB physical VMEM.
    fused_ok = (not force_two_pass) and (4 * slab_bytes + 2 * w_bytes <= 40 * 1024 * 1024)

    if fused_ok:
        out = _feature_enhancement_fused(x.reshape(B, C, HW), w, B, C, HW)
    else:
        out = _feature_enhancement_two_pass(x.reshape(B * C, HW), w, B, C, HW)
    return out.reshape(B, C, H, W)


def feature_enhancement_ref(x, w):
    """Pure-JAX reference mirroring the PyTorch module."""
    pooled = jnp.mean(x, axis=(2, 3))                     # (B, C)
    gate = jax.nn.sigmoid(pooled @ w.T)                   # Linear (no bias) + sigmoid
    return gate[:, :, None, None] * x


if __name__ == "__main__":
    key = jax.random.PRNGKey(0)
    kx, kw, kx2, kw2 = jax.random.split(key, 4)

    # --- primary small shape: exercises the fused single-pass path -----------
    B, C, H, W = 2, 4, 16, 16
    bound = 1.0 / (C ** 0.5)
    x = jax.random.normal(kx, (B, C, H, W), dtype=jnp.float32)
    w = jax.random.uniform(kw, (C, C), jnp.float32, -bound, bound)

    out = jax.block_until_ready(feature_enhancement(x, w))
    ref = feature_enhancement_ref(x, w)
    assert out.shape == (B, C, H, W)
    assert jnp.allclose(out, ref, atol=1e-5, rtol=1e-5)

    # --- ragged shape through the tiled 2-pass fallback (edge masking path) ---
    B2, C2, H2, W2 = 2, 5, 47, 47            # H*W = 2209 -> ragged 2048-lane tiles
    bound2 = 1.0 / (C2 ** 0.5)
    x2 = jax.random.normal(kx2, (B2, C2, H2, W2), dtype=jnp.float32)
    w2 = jax.random.uniform(kw2, (C2, C2), jnp.float32, -bound2, bound2)

    out2 = jax.block_until_ready(feature_enhancement(x2, w2, force_two_pass=True))
    ref2 = feature_enhancement_ref(x2, w2)
    assert out2.shape == (B2, C2, H2, W2)
    assert jnp.allclose(out2, ref2, atol=1e-5, rtol=1e-5)

    print("KERNEL_OK")
</pallas_src>

<mosaic_0001>
module attributes {stable_mosaic.version = 11 : i64} {
  func.func @_fused_kernel(%arg0: i32, %arg1: memref<1x4x256xf32, #tpu.memory_space<vmem>>, %arg2: memref<4x4xf32, #tpu.memory_space<vmem>>, %arg3: memref<1x4x256xf32, #tpu.memory_space<vmem>>) attributes {dimension_semantics = [#tpu.dimension_semantics<parallel>], iteration_bounds = array<i64: 2>, scalar_prefetch = 0 : i64, scratch_operands = 0 : i64, tpu.core_type = #tpu.core_type<tc>, window_params = [{transform_indices = @transform_0, window_bounds = array<i64: 1, 4, 256>}, {pipeline_mode = #tpu.pipeline_mode<synchronous>, transform_indices = @transform_1, window_bounds = array<i64: 4, 4>}, {transform_indices = @transform_2, window_bounds = array<i64: 1, 4, 256>}]} {
    %c0 = arith.constant 0 : index
    %c0_0 = arith.constant 0 : index
    %c0_1 = arith.constant 0 : index
    %0 = vector.load %arg1[%c0, %c0_0, %c0_1] : memref<1x4x256xf32, #tpu.memory_space<vmem>>, vector<1x4x256xf32>
    %1 = vector.shape_cast %0 : vector<1x4x256xf32> to vector<4x256xf32>
    %cst = arith.constant dense<0.000000e+00> : vector<4xf32>
    %2 = vector.multi_reduction <add>, %1, %cst [1] : vector<4x256xf32> to vector<4xf32>
    %3 = vector.shape_cast %2 : vector<4xf32> to vector<4x1xf32>
    %cst_2 = arith.constant 3.906250e-03 : f32
    %4 = vector.broadcast %cst_2 : f32 to vector<4x1xf32>
    %5 = arith.mulf %3, %4 : vector<4x1xf32>
    %6 = tpu.iota {dimensions = array<i32: 0>} : vector<4x4xi32>
    %7 = tpu.iota {dimensions = array<i32: 1>} : vector<4x4xi32>
    %8 = arith.cmpi eq, %6, %7 : vector<4x4xi32>
    %cst_3 = arith.constant 0.000000e+00 : f32
    %9 = vector.shape_cast %5 : vector<4x1xf32> to vector<4x1xf32>
    %10 = vector.broadcast %9 : vector<4x1xf32> to vector<4x4xf32>
    %11 = vector.broadcast %cst_3 : f32 to vector<4x4xf32>
    %12 = arith.select %8, %10, %11 : vector<4x4xi1>, vector<4x4xf32>
    %cst_4 = arith.constant dense<0.000000e+00> : vector<4xf32>
    %13 = vector.multi_reduction <add>, %12, %cst_4 [0] : vector<4x4xf32> to vector<4xf32>
    %14 = vector.shape_cast %13 : vector<4xf32> to vector<1x4xf32>
    %c0_5 = arith.constant 0 : index
    %c0_6 = arith.constant 0 : index
    %15 = vector.load %arg2[%c0_5, %c0_6] : memref<4x4xf32, #tpu.memory_space<vmem>>, vector<4x4xf32>
    %16 = vector.broadcast %14 : vector<1x4xf32> to vector<4x4xf32>
    %17 = arith.mulf %15, %16 : vector<4x4xf32>
    %cst_7 = arith.constant dense<0.000000e+00> : vector<4xf32>
    %18 = vector.multi_reduction <add>, %17, %cst_7 [1] : vector<4x4xf32> to vector<4xf32>
    %19 = vector.shape_cast %18 : vector<4xf32> to vector<4x1xf32>
    %20 = arith.negf %19 : vector<4x1xf32>
    %21 = math.exp %20 : vector<4x1xf32>
    %cst_8 = arith.constant 1.000000e+00 : f32
    %22 = vector.broadcast %cst_8 : f32 to vector<4x1xf32>
    %23 = arith.addf %22, %21 : vector<4x1xf32>
    %24 = arith.divf %22, %23 : vector<4x1xf32>
    %c0_9 = arith.constant 0 : index
    %c0_10 = arith.constant 0 : index
    %c0_11 = arith.constant 0 : index
    %25 = vector.load %arg1[%c0_9, %c0_10, %c0_11] : memref<1x4x256xf32, #tpu.memory_space<vmem>>, vector<1x4x256xf32>
    %26 = vector.shape_cast %25 : vector<1x4x256xf32> to vector<4x256xf32>
    %27 = vector.broadcast %24 : vector<4x1xf32> to vector<4x256xf32>
    %28 = arith.mulf %27, %26 : vector<4x256xf32>
    %c0_12 = arith.constant 0 : index
    %c0_13 = arith.constant 0 : index
    %c0_14 = arith.constant 0 : index
    %29 = vector.load %arg3[%c0_12, %c0_13, %c0_14] : memref<1x4x256xf32, #tpu.memory_space<vmem>>, vector<1x4x256xf32>
    %30 = vector.shape_cast %29 : vector<1x4x256xf32> to vector<4x256xf32>
    %31 = vector.shape_cast %28 : vector<4x256xf32> to vector<1x4x256xf32>
    tpu.vector_store %arg3[%c0_12, %c0_13, %c0_14], %31 {strides = array<i32>} : memref<1x4x256xf32, #tpu.memory_space<vmem>>, vector<1x4x256xf32>,
    return
  }
  func.func @transform_0(%arg0: i32) -> (i32, i32, i32) {
    %c0_i32 = arith.constant 0 : i32
    %c0_i32_0 = arith.constant 0 : i32
    %c0_i32_1 = arith.constant 0 : i32
    return %arg0, %c0_i32, %c0_i32_0 : i32, i32, i32
  }
  func.func @transform_1(%arg0: i32) -> (i32, i32) {
    %c0_i32 = arith.constant 0 : i32
    %c0_i32_0 = arith.constant 0 : i32
    %c0_i32_1 = arith.constant 0 : i32
    return %c0_i32, %c0_i32_0 : i32, i32
  }
  func.func @transform_2(%arg0: i32) -> (i32, i32, i32) {
    %c0_i32 = arith.constant 0 : i32
    %c0_i32_0 = arith.constant 0 : i32
    %c0_i32_1 = arith.constant 0 : i32
    return %arg0, %c0_i32, %c0_i32_0 : i32, i32, i32
  }
}

</mosaic_0001>

<llo_original>
// kernel: tpu_custom_call.1
$region0: #{tpu_custom_call.1}
  #allocation0 [shape = 'u32[]', space=smem, size = 0x4, offset = 0x4, fixed_abs, tag = 'smem constant byte address 0x4 - core index']
  #allocation1 [shape = 'u32[144,128]{1,0:T(1,128)}', space=vmem, size = 0x12000, scoped, tag = 'internal scratch']
  %s0 = inlined_call_operand.hbm [shape: f32[2,4,256], index: 0, kind: input, shape index: {}]
  %s1 = inlined_call_operand.hbm [shape: f32[4,4], index: 1, kind: input, shape index: {}]
  %s2 = inlined_call_operand.hbm [shape: f32[2,4,256], index: 2, kind: output, shape index: {}]
  %s3 = sld [smem:[#allocation0]]
  $region49: #{tpu_custom_call.1} parent=0
    _
  %s5 = ssub.s32 1, %s3
  %s6 = scalar_select 0, %s5, %s3
  $region1: #{tpu_custom_call.1} parent=0
    #allocation2 [shape = 'u8[8192]{0}', space=vmem, size = 0x2000, scoped, tag = 'input window, operand 0']
    #allocation3 [shape = 's32[2]{0}', space=sflag, size = 0x8, scoped, tag = 'scoped memory for tpu_custom_call.1']
    #allocation4 [shape = 's32[2]{0}', space=sflag, size = 0x8, scoped, tag = 'scoped memory for tpu_custom_call.1']
    #allocation5 [shape = 'u8[2048]{0}', space=vmem, size = 0x800, scoped, tag = 'input window, operand 1, single buffered']
    #allocation6 [shape = 's32[1]{0}', space=sflag, size = 0x4, scoped, tag = 'scoped memory for tpu_custom_call.1']
    #allocation7 [shape = 'u8[8192]{0}', space=vmem, size = 0x2000, scoped, tag = 'output window, operand 0']
    %7 = vsyncpa [#allocation3], 0
    %s8 = scalar_lea.sflag [#allocation3], 1
    %9 = vsyncpa %s8, 0
    %10 = vsyncpa [#allocation6], 0
    %11 = vsyncpa [#allocation4], 0
    %s12 = scalar_lea.sflag [#allocation4], 1
    %13 = vsyncpa %s12, 0
    loop: start=0, step=1, limit=4
    $region2: #{tpu_custom_call.1} parent=1 // loop_pre_header
      _
    $region3: #{tpu_custom_call.1} parent=1 // loop_header
      %s15 = sphi 0, %s19
      %p16 = scmp.ge.s32.totalorder %s15, 4
      %s25 = sphi 0, %s27
      %s28 = sphi 0, %s25
      %s29 = sphi 0, %s28
      %s45 = sphi 0, %s29
      %s49 = sphi 0, %s49
      %s51 = sphi 0, %s49
      %s52 = sphi 0, %s51
      %s66 = sphi 0, %s52
      %s72 = sphi 0, %s74
      %s75 = sphi 0, %s72
      %s76 = sphi 0, %s75
      %s92 = sphi 0, %s76
    $region4: #{tpu_custom_call.1} parent=1 // loop_header_branch
      %18 = sbr.rel (%p16) target = $region8
    $region5: #{tpu_custom_call.1} parent=1 // loop_body
      %s20 = ssub.s32 %s15, 1
      %s21 = ssub.s32 %s15, 2
      %s22 = sadd.s32 %s15, 1
      %s23 = ssub.s32 %s15, %s22
      %p24 = scmp.eq.s32.totalorder %s23, 0
      %s26 = sadd.s32 %s25, 1
      %s27 = scalar_select %p24, %s25, %s26
      %p30 = pneg %p24
      %p31 = scmp.eq.s32.totalorder %s15, 1
      %p32 = por %p30, %p31
      %p33 = scmp.ne.s32.totalorder %s25, %s28
      %p34 = scmp.eq.s32.totalorder %s15, 0
      %p35 = por %p33, %p34
      %p36 = scmp.ne.s32.totalorder %s25, %s28
      %p37 = scmp.eq.s32.totalorder %s20, 1
      %p38 = por %p36, %p37
      %p39 = scmp.ne.s32.totalorder %s28, %s29
      %p40 = scmp.eq.s32.totalorder %s20, 0
      %p41 = por %p39, %p40
      %p42 = scmp.ne.s32.totalorder %s28, %s29
      %p43 = scmp.eq.s32.totalorder %s21, 1
      %p44 = por %p42, %p43
      %p46 = scmp.ne.s32.totalorder %s29, %s45
      %p47 = scmp.eq.s32.totalorder %s21, 0
      %p48 = por %p46, %p47
      %s50 = sadd.s32 %s49, 1
      %p53 = scmp.eq.s32.totalorder %s15, 1
      %p54 = scmp.ne.s32.totalorder %s49, %s51
      %p55 = scmp.eq.s32.totalorder %s15, 0
      %p56 = por %p54, %p55
      %p57 = scmp.ne.s32.totalorder %s49, %s51
      %p58 = scmp.eq.s32.totalorder %s20, 1
      %p59 = por %p57, %p58
      %p60 = scmp.ne.s32.totalorder %s51, %s52
      %p61 = scmp.eq.s32.totalorder %s20, 0
      %p62 = por %p60, %p61
      %p63 = scmp.ne.s32.totalorder %s51, %s52
      %p64 = scmp.eq.s32.totalorder %s21, 1
      %p65 = por %p63, %p64
      %p67 = scmp.ne.s32.totalorder %s52, %s66
      %p68 = scmp.eq.s32.totalorder %s21, 0
      %p69 = por %p67, %p68
      %s70 = ssub.s32 %s15, %s22
      %p71 = scmp.eq.s32.totalorder %s70, 0
      %s73 = sadd.s32 %s72, 1
      %s74 = scalar_select %p71, %s72, %s73
      %p77 = pneg %p71
      %p78 = scmp.eq.s32.totalorder %s15, 1
      %p79 = por %p77, %p78
      %p80 = scmp.ne.s32.totalorder %s72, %s75
      %p81 = scmp.eq.s32.totalorder %s15, 0
      %p82 = por %p80, %p81
      %p83 = scmp.ne.s32.totalorder %s72, %s75
      %p84 = scmp.eq.s32.totalorder %s20, 1
      %p85 = por %p83, %p84
      %p86 = scmp.ne.s32.totalorder %s75, %s76
      %p87 = scmp.eq.s32.totalorder %s20, 0
      %p88 = por %p86, %p87
      %p89 = scmp.ne.s32.totalorder %s75, %s76
      %p90 = scmp.eq.s32.totalorder %s21, 1
      %p91 = por %p89, %p90
      %p93 = scmp.ne.s32.totalorder %s76, %s92
      %p94 = scmp.eq.s32.totalorder %s21, 0
      %p95 = por %p93, %p94
      %p96 = scmp.le.s32.totalorder 1, %s15
      %p97 = scmp.lt.s32.totalorder %s15, 3
      %p98 = pnand %p96, %p97
      %p99 = pneg %p98
      // Predicated region
      $region9: #{tpu_custom_call.1} parent=5 // pred_check
        _
      $region10: #{tpu_custom_call.1} parent=5 // pred_check_branch
        %101 = sbr.rel (%p98) target = $region12
      $region11: #{tpu_custom_call.1} parent=5 // pred_region
        %s102 = ssub.s32 %s15, 1
        // Predicated region
        $region13: #{tpu_custom_call.1} parent=11 // pred_check
          %p103 = pneg %p62
        $region14: #{tpu_custom_call.1} parent=11 // pred_check_branch
          %105 = sbr.rel (%p103) target = $region16
        $region15: #{tpu_custom_call.1} parent=11 // pred_region
          %s107 = ssub.s32 64, 64
          %108 = vsyncadd [#allocation6], %s107
          %s110 = sshll.u32 [#allocation5], 4
          %s111 = int_to_ptr.vmem [resolvable:$true] %s110
          %113 = dma.hbm_to_vmem [thread:$0]  %s1, 64, %s111, [#allocation6]
        $region16: #{tpu_custom_call.1} parent=11 // pred_fallthru
          _
      $region12: #{tpu_custom_call.1} parent=5 // pred_fallthru
        _
      %p114 = scmp.lt.s32.totalorder %s15, 2
      // Predicated region
      $region17: #{tpu_custom_call.1} parent=5 // pred_check
        %p115 = pneg %p114
      $region18: #{tpu_custom_call.1} parent=5 // pred_check_branch
        %117 = sbr.rel (%p115) target = $region20
      $region19: #{tpu_custom_call.1} parent=5 // pred_region
        // Predicated region
        $region21: #{tpu_custom_call.1} parent=19 // pred_check
          %p118 = pneg %p35
        $region22: #{tpu_custom_call.1} parent=19 // pred_check_branch
          %120 = sbr.rel (%p118) target = $region24
        $region23: #{tpu_custom_call.1} parent=19 // pred_region
          %s121 = sand.u32 %s25, 1
          %s122 = scalar_lea.sflag [#allocation3], %s121
          %s123 = sand.u32 %s25, 1
          %s124 = smul.addr %s123, 8
          %s125 = scalar_lea.vmem [#allocation2], %s124
          %s127 = ssub.s32 128, 128
          %128 = vsyncadd %s122, %s127
          %s129 = smul.addr %s15, 2
          %s130 = smul.addr %s129, 64
          %s131 = scalar_lea.hbm %s0, %s130
          %s133 = sshll.u32 %s125, 4
          %s134 = int_to_ptr.vmem [resolvable:$true] %s133
          %136 = dma.hbm_to_vmem [thread:$0]  %s131, 128, %s134, %s122
        $region24: #{tpu_custom_call.1} parent=19 // pred_fallthru
          _
      $region20: #{tpu_custom_call.1} parent=5 // pred_fallthru
        _
      %p137 = scmp.le.s32.totalorder 1, %s15
      %p138 = scmp.lt.s32.totalorder %s15, 3
      %p139 = pnand %p137, %p138
      %p140 = pneg %p139
      // Predicated region
      $region25: #{tpu_custom_call.1} parent=5 // pred_check
        _
      $region26: #{tpu_custom_call.1} parent=5 // pred_check_branch
        %142 = sbr.rel (%p139) target = $region28
      $region27: #{tpu_custom_call.1} parent=5 // pred_region
        %s143 = ssub.s32 %s15, 1
        %s144 = sand.u32 %s28, 1
        %s145 = scalar_lea.sflag [#allocation3], %s144
        %s146 = sand.u32 %s28, 1
        %s147 = smul.addr %s146, 8
        %s148 = scalar_lea.vmem [#allocation2], %s147
        // Predicated region
        $region29: #{tpu_custom_call.1} parent=27 // pred_check
          %p149 = pneg %p41
        $region30: #{tpu_custom_call.1} parent=27 // pred_check_branch
          %151 = sbr.rel (%p149) target = $region32
        $region31: #{tpu_custom_call.1} parent=27 // pred_region
          %152 = dma.done %s145, 128
        $region32: #{tpu_custom_call.1} parent=27 // pred_fallthru
          _
        // Predicated region
        $region33: #{tpu_custom_call.1} parent=27 // pred_check
          %p153 = pneg %p62
        $region34: #{tpu_custom_call.1} parent=27 // pred_check_branch
          %155 = sbr.rel (%p153) target = $region36
        $region35: #{tpu_custom_call.1} parent=27 // pred_region
          %156 = dma.done [#allocation6], 64
        $region36: #{tpu_custom_call.1} parent=27 // pred_fallthru
          _
        %s157 = sand.u32 %s28, 1
        %s158 = scalar_lea.sflag [#allocation3], %s157
        %s159 = sand.u32 %s28, 1
        %s160 = smul.addr %s159, 8
        %s161 = scalar_lea.vmem [#allocation2], %s160
        %p162 = pneg %p41
        %p163 = pneg %p38
        %p164 = pneg %p62
        %p165 = pneg %p59
        %p166 = pneg %p88
        %p167 = pneg %p85
        %s168 = sand.u32 %s75, 1
        %s169 = scalar_lea.sflag [#allocation4], %s168
        %s170 = sand.u32 %s75, 1
        %s171 = smul.addr %s170, 8
        %s172 = scalar_lea.vmem [#allocation7], %s171
        %v173 = vld [vmem:[%s148] sm:$0xff]
        %v175 = vcombine.high %v173, %v173
        %vm177 = vcmask 1043456
        %v178 = vsel %vm177, %v173, 0.0
        %v179 = vsel %vm177, %v175, 0.0
        %v180 = vadd.f32 %v178, %v179
        %181 = vadd.xlane.f32.xlu0 %v180
        %v182 = vpop.xlane.xlu0 %181
        %v183 = vmul.f32 %v182, 0.00390625
        %v184 = vlaneseq
        %v185 = vshrl.u32 %v184, 7
        %v186 = vlaneseq
        %v187 = vand.u32 %v186, 127
        %vm188 = vcmp.eq.s32.totalorder %v185, %v187
        %v189 = vsel %vm188, %v183, 0.0
        %vm190 = vcmask 27648
        %v191 = vsel %vm190, %v189, 0.0
        %v192 = vrot.slane %v191, 4
        %v193 = vadd.f32 %v191, %v192
        %v194 = vrot.slane %v193, 2
        %v195 = vadd.f32 %v193, %v194
        %v196 = vrot.slane %v195, 1
        %v197 = vadd.f32 %v195, %v196
        %v198 = vld [vmem:[#allocation5] sm:$0xf]
        %v199 = vmul.f32 %v198, %v197
        %v200 = vsel %vm190, %v199, 0.0
        %201 = vadd.xlane.f32.xlu0 %v200
        %v202 = vpop.xlane.xlu0 %201
        %v203 = vxor.u32 %v202, 2147483648
        %v204 = vmul.f32 %v203, 1.442695
        %v205 = vpow.pop %v204
        %v206 = vadd.f32 %v205, 1.0
        %v207 = vrcp.pop %v206
        %v208 = vmul.f32 1.0, %v207
        %v209 = vmul.f32 %v208, %v173
        %v210 = vmul.f32 %v208, %v175
        %v213 = vcombine.low %v209, %v210
        %215 = vst [vmem:[%s172] sm:$0xff] %v213
        %s216 = sand.u32 %s75, 1
        %s217 = scalar_lea.sflag [#allocation4], %s216
        %s218 = sand.u32 %s75, 1
        %s219 = smul.addr %s218, 8
        %s220 = scalar_lea.vmem [#allocation7], %s219
        // Predicated region
        $region37: #{tpu_custom_call.1} parent=27 // pred_check
          %p221 = pneg %p85
        $region38: #{tpu_custom_call.1} parent=27 // pred_check_branch
          %223 = sbr.rel (%p221) target = $region40
        $region39: #{tpu_custom_call.1} parent=27 // pred_region
          %s225 = ssub.s32 128, 128
          %226 = vsyncadd %s217, %s225
          %s227 = smul.addr %s20, 2
          %s228 = smul.addr %s227, 64
          %s229 = scalar_lea.hbm %s2, %s228
          %s231 = sshll.u32 %s220, 4
          %s232 = int_to_ptr.vmem [resolvable:$true] %s231
          %234 = dma.vmem_to_hbm [thread:$0]  %s232, 128, %s229, %s217
        $region40: #{tpu_custom_call.1} parent=27 // pred_fallthru
          _
      $region28: #{tpu_custom_call.1} parent=5 // pred_fallthru
        _
      %p235 = scmp.le.s32.totalorder 2, %s15
      // Predicated region
      $region41: #{tpu_custom_call.1} parent=5 // pred_check
        %p236 = pneg %p235
      $region42: #{tpu_custom_call.1} parent=5 // pred_check_branch
        %238 = sbr.rel (%p236) target = $region44
      $region43: #{tpu_custom_call.1} parent=5 // pred_region
        %s239 = ssub.s32 %s15, 2
        // Predicated region
        $region45: #{tpu_custom_call.1} parent=43 // pred_check
          %p240 = pneg %p91
        $region46: #{tpu_custom_call.1} parent=43 // pred_check_branch
          %242 = sbr.rel (%p240) target = $region48
        $region47: #{tpu_custom_call.1} parent=43 // pred_region
          %s243 = sand.u32 %s76, 1
          %s244 = scalar_lea.sflag [#allocation4], %s243
          %s245 = sand.u32 %s76, 1
          %s246 = smul.addr %s245, 8
          %s247 = scalar_lea.vmem [#allocation7], %s246
          %248 = dma.done %s244, 128
        $region48: #{tpu_custom_call.1} parent=43 // pred_fallthru
          _
      $region44: #{tpu_custom_call.1} parent=5 // pred_fallthru
        _
    $region6: #{tpu_custom_call.1} parent=1 // loop_footer
      %s19 = sadd.s32 1, %s15
    $region7: #{tpu_custom_call.1} parent=1 // loop_footer_branch
      %14 = sbr.rel target = $region3
    $region8: #{tpu_custom_call.1} parent=1 // loop_exit
      _
    %249 = vsyncpa [#allocation3], 1
    %s250 = scalar_lea.sflag [#allocation3], 1
    %251 = vsyncpa %s250, 1
    %252 = vsyncpa [#allocation6], 1
    %253 = vsyncpa [#allocation4], 1
    %s254 = scalar_lea.sflag [#allocation4], 1
    %255 = vsyncpa %s254, 1

</llo_original>
